<compile_context>
chip_gen: v6e
topology: v6e:2x2x1
jax: 0.10.0
libtpu: 0.0.40
codegen_flags: <defaults>
</compile_context>

<pallas_src>
import math
from functools import partial

import jax
import jax.numpy as jnp
from jax.experimental import pallas as pl
from jax.experimental.pallas import tpu as pltpu


def noisy_linear_kernel(x_ref, w_ref, ms_ref, wn_ref, b_ref, mbs_ref, bn_ref,
                        o_ref, acc_ref, *, use_bf16_mxu):
    k = pl.program_id(2)

    @pl.when(k == 0)
    def _init():
        acc_ref[...] = jnp.zeros_like(acc_ref)

    # Fused noisy-weight construction for this (TN, TK) tile (VPU elementwise).
    noisy_w = w_ref[...] + wn_ref[...] * ms_ref[...]
    x = x_ref[...]
    if use_bf16_mxu:
        # Optional: feed the MXU bf16 (full-rate on v6e/v7x); f32 accumulate.
        noisy_w = noisy_w.astype(jnp.bfloat16)
        x = x.astype(jnp.bfloat16)

    # MXU: contract in_features (last dim of both operands) -> (TM, TN).
    # No transpose of noisy_w is materialized.
    acc_ref[...] += jax.lax.dot_general(
        x, noisy_w,
        dimension_numbers=(((1,), (1,)), ((), ())),
        preferred_element_type=jnp.float32)

    @pl.when(k == pl.num_programs(2) - 1)
    def _finalize():
        # Bias math done once per output tile, only on the last K step.
        noisy_b = b_ref[...] + bn_ref[...] * mbs_ref[...]      # (1, TN)
        o_ref[...] = (acc_ref[...] + noisy_b).astype(o_ref.dtype)


def _round_up(x, m):
    return ((x + m - 1) // m) * m


def _pad2(a, rows, cols):
    pr, pc = rows - a.shape[0], cols - a.shape[1]
    if pr == 0 and pc == 0:
        return a
    return jnp.pad(a, ((0, pr), (0, pc)))


def noisy_linear2_forward(x, weight, ma_sigma, anoise, bias, mb_sigma, bnoise,
                          *, tm=128, tn=256, tk=256, use_bf16_mxu=False):
    """Training-mode forward of NoisyLinear2.

    x:        (batch, in_features)
    weight:   (out_features, in_features)
    ma_sigma: (out_features, in_features)
    anoise:   (out_features, in_features)  -- standard-normal samples
    bias:     (out_features,)
    mb_sigma: (out_features,)
    bnoise:   (out_features,)              -- standard-normal samples
    returns:  (batch, out_features)
    """
    batch, in_f = x.shape
    out_f = weight.shape[0]

    # Shrink tiles for small problems while keeping (8, 128) alignment.
    tm = min(tm, _round_up(batch, 8))
    tn = min(tn, _round_up(out_f, 128))
    tk = min(tk, _round_up(in_f, 128))

    mp = _round_up(batch, tm)
    np_ = _round_up(out_f, tn)
    kp = _round_up(in_f, tk)

    # Zero-pad to tile multiples (no-ops for already-aligned shapes).
    xp = _pad2(x, mp, kp)
    wp = _pad2(weight, np_, kp)
    msp = _pad2(ma_sigma, np_, kp)
    wnp = _pad2(anoise, np_, kp)
    bp = _pad2(bias.reshape(1, out_f), 1, np_)
    mbsp = _pad2(mb_sigma.reshape(1, out_f), 1, np_)
    bnp = _pad2(bnoise.reshape(1, out_f), 1, np_)

    grid = (mp // tm, np_ // tn, kp // tk)

    x_spec = pl.BlockSpec((tm, tk), lambda i, j, k: (i, k))
    w_spec = pl.BlockSpec((tn, tk), lambda i, j, k: (j, k))
    b_spec = pl.BlockSpec((1, tn), lambda i, j, k: (0, j))
    o_spec = pl.BlockSpec((tm, tn), lambda i, j, k: (i, j))

    out_padded = pl.pallas_call(
        partial(noisy_linear_kernel, use_bf16_mxu=use_bf16_mxu),
        out_shape=jax.ShapeDtypeStruct((mp, np_), x.dtype),
        grid_spec=pltpu.PrefetchScalarGridSpec(
            num_scalar_prefetch=0,
            grid=grid,
            in_specs=[
                x_spec,   # x
                w_spec,   # weight
                w_spec,   # ma_sigma
                w_spec,   # anoise
                b_spec,   # bias
                b_spec,   # mb_sigma
                b_spec,   # bnoise
            ],
            out_specs=o_spec,
            scratch_shapes=[pltpu.VMEM((tm, tn), jnp.float32)]),
        compiler_params=pltpu.CompilerParams(
            dimension_semantics=("parallel", "parallel", "arbitrary")),
    )(xp, wp, msp, wnp, bp, mbsp, bnp)

    return out_padded[:batch, :out_f]


def init_params(key, in_features, out_features, sigma0=0.017):
    """Deterministic parameter init mirroring NoisyLinear2.reset_parameters()."""
    kw, kb = jax.random.split(key)
    # kaiming_uniform_(a=sqrt(5)) on (out, in): bound = 1 / sqrt(fan_in)
    fan_in = in_features
    w_bound = 1.0 / math.sqrt(fan_in)
    weight = jax.random.uniform(kw, (out_features, in_features),
                                minval=-w_bound, maxval=w_bound, dtype=jnp.float32)
    ma_sigma = jnp.full((out_features, in_features), sigma0, dtype=jnp.float32)
    b_bound = 1.0 / math.sqrt(fan_in)
    bias = jax.random.uniform(kb, (out_features,),
                              minval=-b_bound, maxval=b_bound, dtype=jnp.float32)
    mb_sigma = jnp.full((out_features,), sigma0, dtype=jnp.float32)
    return weight, ma_sigma, bias, mb_sigma


def _run_case(key, batch, in_features, out_features, tol):
    k_param, k_x, k_wn, k_bn = jax.random.split(key, 4)
    weight, ma_sigma, bias, mb_sigma = init_params(k_param, in_features, out_features)

    # Standard-normal noise draws (stand-in for .data.normal_()).
    anoise = jax.random.normal(k_wn, (out_features, in_features), dtype=jnp.float32)
    bnoise = jax.random.normal(k_bn, (out_features,), dtype=jnp.float32)
    x = jax.random.normal(k_x, (batch, in_features), dtype=jnp.float32)

    y = noisy_linear2_forward(x, weight, ma_sigma, anoise, bias, mb_sigma, bnoise)
    y = jax.block_until_ready(y)

    # Pure-JAX reference check.
    noisy_w = weight + anoise * ma_sigma
    noisy_b = bias + bnoise * mb_sigma
    y_ref = x @ noisy_w.T + noisy_b
    assert y.shape == (batch, out_features)
    err = float(jnp.max(jnp.abs(y - y_ref)))
    assert jnp.allclose(y, y_ref, atol=tol, rtol=tol), f"max abs err = {err}"


if __name__ == "__main__":
    key = jax.random.PRNGKey(0)
    k1, k2 = jax.random.split(key)

    # Small, unaligned shapes (exercises the zero-padding path, single tile).
    _run_case(k1, batch=8, in_features=32, out_features=16, tol=1e-4)

    # Multi-tile shapes (exercises the (M, N, K) grid, K-accumulation and
    # last-step bias add; grid = (2, 2, 2) with default 128x256x256 tiles).
    _run_case(k2, batch=256, in_features=512, out_features=384, tol=1e-3)

    print("KERNEL_OK")
</pallas_src>

<mosaic_0001>
module attributes {stable_mosaic.version = 11 : i64} {
  func.func @noisy_linear_kernel(%arg0: i32, %arg1: i32, %arg2: i32, %arg3: memref<8x128xf32, #tpu.memory_space<vmem>>, %arg4: memref<128x128xf32, #tpu.memory_space<vmem>>, %arg5: memref<128x128xf32, #tpu.memory_space<vmem>>, %arg6: memref<128x128xf32, #tpu.memory_space<vmem>>, %arg7: memref<1x128xf32, #tpu.memory_space<vmem>>, %arg8: memref<1x128xf32, #tpu.memory_space<vmem>>, %arg9: memref<1x128xf32, #tpu.memory_space<vmem>>, %arg10: memref<8x128xf32, #tpu.memory_space<vmem>>, %arg11: memref<8x128xf32, #tpu.memory_space<vmem>>) attributes {dimension_semantics = [#tpu.dimension_semantics<parallel>, #tpu.dimension_semantics<parallel>, #tpu.dimension_semantics<arbitrary>], iteration_bounds = array<i64: 1, 1, 1>, scalar_prefetch = 0 : i64, scratch_operands = 1 : i64, tpu.core_type = #tpu.core_type<tc>, window_params = [{transform_indices = @transform_0, window_bounds = array<i64: 8, 128>}, {transform_indices = @transform_1, window_bounds = array<i64: 128, 128>}, {transform_indices = @transform_2, window_bounds = array<i64: 128, 128>}, {transform_indices = @transform_3, window_bounds = array<i64: 128, 128>}, {transform_indices = @transform_4, window_bounds = array<i64: 1, 128>}, {transform_indices = @transform_5, window_bounds = array<i64: 1, 128>}, {transform_indices = @transform_6, window_bounds = array<i64: 1, 128>}, {transform_indices = @transform_7, window_bounds = array<i64: 8, 128>}]} {
    %c0_i32 = arith.constant 0 : i32
    %0 = arith.cmpi eq, %arg2, %c0_i32 : i32
    %1 = arith.extui %0 : i1 to i32
    %c0_i32_0 = arith.constant 0 : i32
    %2 = arith.cmpi ne, %1, %c0_i32_0 : i32
    scf.if %2 {
      %cst_14 = arith.constant 0.000000e+00 : f32
      %16 = vector.broadcast %cst_14 : f32 to vector<8x128xf32>
      %c0_15 = arith.constant 0 : index
      %c0_16 = arith.constant 0 : index
      %17 = vector.load %arg11[%c0_15, %c0_16] : memref<8x128xf32, #tpu.memory_space<vmem>>, vector<8x128xf32>
      tpu.vector_store %arg11[%c0_15, %c0_16], %16 {strides = array<i32>} : memref<8x128xf32, #tpu.memory_space<vmem>>, vector<8x128xf32>,
    } else {
    }
    %c0 = arith.constant 0 : index
    %c0_1 = arith.constant 0 : index
    %3 = vector.load %arg4[%c0, %c0_1] : memref<128x128xf32, #tpu.memory_space<vmem>>, vector<128x128xf32>
    %c0_2 = arith.constant 0 : index
    %c0_3 = arith.constant 0 : index
    %4 = vector.load %arg6[%c0_2, %c0_3] : memref<128x128xf32, #tpu.memory_space<vmem>>, vector<128x128xf32>
    %c0_4 = arith.constant 0 : index
    %c0_5 = arith.constant 0 : index
    %5 = vector.load %arg5[%c0_4, %c0_5] : memref<128x128xf32, #tpu.memory_space<vmem>>, vector<128x128xf32>
    %6 = arith.mulf %4, %5 : vector<128x128xf32>
    %7 = arith.addf %3, %6 : vector<128x128xf32>
    %c0_6 = arith.constant 0 : index
    %c0_7 = arith.constant 0 : index
    %8 = vector.load %arg3[%c0_6, %c0_7] : memref<8x128xf32, #tpu.memory_space<vmem>>, vector<8x128xf32>
    %c0_8 = arith.constant 0 : index
    %c0_9 = arith.constant 0 : index
    %9 = vector.load %arg11[%c0_8, %c0_9] : memref<8x128xf32, #tpu.memory_space<vmem>>, vector<8x128xf32>
    %cst = arith.constant dense<0.000000e+00> : vector<8x128xf32>
    %10 = tpu.matmul %8, %7, %cst {dimension_numbers = #tpu.dot_dimension_numbers<[1], [1], [0], [0], [0, 0, 1, 0], [], []>} : vector<8x128xf32>, vector<128x128xf32>, vector<8x128xf32> -> vector<8x128xf32>
    %11 = arith.addf %9, %10 : vector<8x128xf32>
    %c0_10 = arith.constant 0 : index
    %c0_11 = arith.constant 0 : index
    %12 = vector.load %arg11[%c0_10, %c0_11] : memref<8x128xf32, #tpu.memory_space<vmem>>, vector<8x128xf32>
    tpu.vector_store %arg11[%c0_10, %c0_11], %11 {strides = array<i32>} : memref<8x128xf32, #tpu.memory_space<vmem>>, vector<8x128xf32>,
    %c0_i32_12 = arith.constant 0 : i32
    %13 = arith.cmpi eq, %arg2, %c0_i32_12 : i32
    %14 = arith.extui %13 : i1 to i32
    %c0_i32_13 = arith.constant 0 : i32
    %15 = arith.cmpi ne, %14, %c0_i32_13 : i32
    scf.if %15 {
      %c0_14 = arith.constant 0 : index
      %c0_15 = arith.constant 0 : index
      %16 = vector.load %arg7[%c0_14, %c0_15] : memref<1x128xf32, #tpu.memory_space<vmem>>, vector<1x128xf32>
      %c0_16 = arith.constant 0 : index
      %c0_17 = arith.constant 0 : index
      %17 = vector.load %arg9[%c0_16, %c0_17] : memref<1x128xf32, #tpu.memory_space<vmem>>, vector<1x128xf32>
      %c0_18 = arith.constant 0 : index
      %c0_19 = arith.constant 0 : index
      %18 = vector.load %arg8[%c0_18, %c0_19] : memref<1x128xf32, #tpu.memory_space<vmem>>, vector<1x128xf32>
      %19 = arith.mulf %17, %18 : vector<1x128xf32>
      %20 = arith.addf %16, %19 : vector<1x128xf32>
      %c0_20 = arith.constant 0 : index
      %c0_21 = arith.constant 0 : index
      %21 = vector.load %arg11[%c0_20, %c0_21] : memref<8x128xf32, #tpu.memory_space<vmem>>, vector<8x128xf32>
      %22 = vector.broadcast %20 : vector<1x128xf32> to vector<8x128xf32>
      %23 = arith.addf %21, %22 : vector<8x128xf32>
      %c0_22 = arith.constant 0 : index
      %c0_23 = arith.constant 0 : index
      %24 = vector.load %arg10[%c0_22, %c0_23] : memref<8x128xf32, #tpu.memory_space<vmem>>, vector<8x128xf32>
      tpu.vector_store %arg10[%c0_22, %c0_23], %23 {strides = array<i32>} : memref<8x128xf32, #tpu.memory_space<vmem>>, vector<8x128xf32>,
    } else {
    }
    return
  }
  func.func @transform_0(%arg0: i32, %arg1: i32, %arg2: i32) -> (i32, i32) {
    %c0_i32 = arith.constant 0 : i32
    return %arg0, %arg2 : i32, i32
  }
  func.func @transform_1(%arg0: i32, %arg1: i32, %arg2: i32) -> (i32, i32) {
    %c0_i32 = arith.constant 0 : i32
    return %arg1, %arg2 : i32, i32
  }
  func.func @transform_2(%arg0: i32, %arg1: i32, %arg2: i32) -> (i32, i32) {
    %c0_i32 = arith.constant 0 : i32
    return %arg1, %arg2 : i32, i32
  }
  func.func @transform_3(%arg0: i32, %arg1: i32, %arg2: i32) -> (i32, i32) {
    %c0_i32 = arith.constant 0 : i32
    return %arg1, %arg2 : i32, i32
  }
  func.func @transform_4(%arg0: i32, %arg1: i32, %arg2: i32) -> (i32, i32) {
    %c0_i32 = arith.constant 0 : i32
    %c0_i32_0 = arith.constant 0 : i32
    return %c0_i32, %arg1 : i32, i32
  }
  func.func @transform_5(%arg0: i32, %arg1: i32, %arg2: i32) -> (i32, i32) {
    %c0_i32 = arith.constant 0 : i32
    %c0_i32_0 = arith.constant 0 : i32
    return %c0_i32, %arg1 : i32, i32
  }
  func.func @transform_6(%arg0: i32, %arg1: i32, %arg2: i32) -> (i32, i32) {
    %c0_i32 = arith.constant 0 : i32
    %c0_i32_0 = arith.constant 0 : i32
    return %c0_i32, %arg1 : i32, i32
  }
  func.func @transform_7(%arg0: i32, %arg1: i32, %arg2: i32) -> (i32, i32) {
    %c0_i32 = arith.constant 0 : i32
    return %arg0, %arg1 : i32, i32
  }
}

</mosaic_0001>

<llo_original>
// kernel: tpu_custom_call.1
$region0: #{tpu_custom_call.1}
  #allocation0 [shape = 'u32[]', space=smem, size = 0x4, offset = 0x4, fixed_abs, tag = 'smem constant byte address 0x4 - core index']
  #allocation1 [shape = 'u32[144,128]{1,0:T(1,128)}', space=vmem, size = 0x12000, scoped, tag = 'internal scratch']
  #allocation2 [shape = 'f32[8,128]{1,0:T(8,128)}', space=vmem, size = 0x1000, scoped, tag = 'scratch operand']
  %s0 = inlined_call_operand.hbm [shape: f32[8,128], index: 0, kind: input, shape index: {}]
  %s1 = inlined_call_operand.hbm [shape: f32[128,128], index: 1, kind: input, shape index: {}]
  %s2 = inlined_call_operand.hbm [shape: f32[128,128], index: 2, kind: input, shape index: {}]
  %s3 = inlined_call_operand.hbm [shape: f32[128,128], index: 3, kind: input, shape index: {}]
  %s4 = inlined_call_operand.vmem [shape: f32[1,128], index: 4, kind: input, shape index: {}]
  %s5 = inlined_call_operand.vmem [shape: f32[1,128], index: 5, kind: input, shape index: {}]
  %s6 = inlined_call_operand.vmem [shape: f32[1,128], index: 6, kind: input, shape index: {}]
  %s7 = inlined_call_operand.hbm [shape: f32[8,128], index: 7, kind: output, shape index: {}]
  %s8 = sld [smem:[#allocation0]]
  $region62: #{tpu_custom_call.1} parent=0
    _
  %s10 = ssub.s32 1, %s8
  %s11 = scalar_select 0, %s10, %s8
  $region1: #{tpu_custom_call.1} parent=0
    #allocation3 [shape = 'u8[4096]{0}', space=vmem, size = 0x1000, scoped, tag = 'input window, operand 0, single buffered']
    #allocation4 [shape = 's32[1]{0}', space=sflag, size = 0x4, scoped, tag = 'scoped memory for tpu_custom_call.1']
    #allocation5 [shape = 's32[1]{0}', space=sflag, size = 0x4, scoped, tag = 'scoped memory for tpu_custom_call.1']
    #allocation6 [shape = 'u8[65536]{0}', space=vmem, size = 0x10000, scoped, tag = 'input window, operand 1, single buffered']
    #allocation7 [shape = 's32[1]{0}', space=sflag, size = 0x4, scoped, tag = 'scoped memory for tpu_custom_call.1']
    #allocation8 [shape = 'u8[65536]{0}', space=vmem, size = 0x10000, scoped, tag = 'input window, operand 2, single buffered']
    #allocation9 [shape = 'u8[65536]{0}', space=vmem, size = 0x10000, scoped, tag = 'input window, operand 3, single buffered']
    #allocation10 [shape = 's32[1]{0}', space=sflag, size = 0x4, scoped, tag = 'scoped memory for tpu_custom_call.1']
    #allocation11 [shape = 'u8[4096]{0}', space=vmem, size = 0x1000, scoped, tag = 'output window, operand 0, single buffered']
    %12 = vsyncpa [#allocation4], 0
    %13 = vsyncpa [#allocation7], 0
    %14 = vsyncpa [#allocation10], 0
    %15 = vsyncpa [#allocation5], 0
    // Predicated region
    $region2: #{tpu_custom_call.1} parent=1 // pred_check
      _
    $region3: #{tpu_custom_call.1} parent=1 // pred_check_branch
      %17 = sbr.rel (0) target = $region5
    $region4: #{tpu_custom_call.1} parent=1 // pred_region
      %s19 = ssub.s32 128, 128
      %20 = vsyncadd [#allocation4], %s19
      %s22 = sshll.u32 [#allocation3], 4
      %s23 = int_to_ptr.vmem [resolvable:$true] %s22
      %25 = dma.hbm_to_vmem [thread:$0]  %s0, 128, %s23, [#allocation4]
    $region5: #{tpu_custom_call.1} parent=1 // pred_fallthru
      _
    // Predicated region
    $region6: #{tpu_custom_call.1} parent=1 // pred_check
      _
    $region7: #{tpu_custom_call.1} parent=1 // pred_check_branch
      %27 = sbr.rel (0) target = $region9
    $region8: #{tpu_custom_call.1} parent=1 // pred_region
      %s29 = ssub.s32 2048, 2048
      %30 = vsyncadd [#allocation7], %s29
      %s31 = sshll.u32 [#allocation6], 4
      %s32 = int_to_ptr.vmem [resolvable:$true] %s31
      %37 = dma.hbm_to_vmem [thread:$0]  %s1, 2048, %s32, [#allocation7], 128, 128, 8
    $region9: #{tpu_custom_call.1} parent=1 // pred_fallthru
      _
    // Predicated region
    $region10: #{tpu_custom_call.1} parent=1 // pred_check
      _
    $region11: #{tpu_custom_call.1} parent=1 // pred_check_branch
      %39 = sbr.rel (0) target = $region13
    $region12: #{tpu_custom_call.1} parent=1 // pred_region
      %s41 = ssub.s32 2048, 2048
      %42 = vsyncadd [#allocation7], %s41
      %s43 = sshll.u32 [#allocation8], 4
      %s44 = int_to_ptr.vmem [resolvable:$true] %s43
      %49 = dma.hbm_to_vmem [thread:$0]  %s2, 2048, %s44, [#allocation7], 128, 128, 8
    $region13: #{tpu_custom_call.1} parent=1 // pred_fallthru
      _
    // Predicated region
    $region14: #{tpu_custom_call.1} parent=1 // pred_check
      _
    $region15: #{tpu_custom_call.1} parent=1 // pred_check_branch
      %51 = sbr.rel (0) target = $region17
    $region16: #{tpu_custom_call.1} parent=1 // pred_region
      %s53 = ssub.s32 2048, 2048
      %54 = vsyncadd [#allocation10], %s53
      %s55 = sshll.u32 [#allocation9], 4
      %s56 = int_to_ptr.vmem [resolvable:$true] %s55
      %61 = dma.hbm_to_vmem [thread:$0]  %s3, 2048, %s56, [#allocation10], 128, 128, 8
    $region17: #{tpu_custom_call.1} parent=1 // pred_fallthru
      _
    // Predicated region
    $region18: #{tpu_custom_call.1} parent=1 // pred_check
      _
    $region19: #{tpu_custom_call.1} parent=1 // pred_check_branch
      %63 = sbr.rel (0) target = $region21
    $region20: #{tpu_custom_call.1} parent=1 // pred_region
      _
    $region21: #{tpu_custom_call.1} parent=1 // pred_fallthru
      _
    // Predicated region
    $region22: #{tpu_custom_call.1} parent=1 // pred_check
      _
    $region23: #{tpu_custom_call.1} parent=1 // pred_check_branch
      %65 = sbr.rel (0) target = $region25
    $region24: #{tpu_custom_call.1} parent=1 // pred_region
      _
    $region25: #{tpu_custom_call.1} parent=1 // pred_fallthru
      _
    // Predicated region
    $region26: #{tpu_custom_call.1} parent=1 // pred_check
      _
    $region27: #{tpu_custom_call.1} parent=1 // pred_check_branch
      %67 = sbr.rel (0) target = $region29
    $region28: #{tpu_custom_call.1} parent=1 // pred_region
      _
    $region29: #{tpu_custom_call.1} parent=1 // pred_fallthru
      _
    // Predicated region
    $region30: #{tpu_custom_call.1} parent=1 // pred_check
      _
    $region31: #{tpu_custom_call.1} parent=1 // pred_check_branch
      %69 = sbr.rel (0) target = $region33
    $region32: #{tpu_custom_call.1} parent=1 // pred_region
      %70 = dma.done [#allocation4], 128
    $region33: #{tpu_custom_call.1} parent=1 // pred_fallthru
      _
    // Predicated region
    $region34: #{tpu_custom_call.1} parent=1 // pred_check
      _
    $region35: #{tpu_custom_call.1} parent=1 // pred_check_branch
      %72 = sbr.rel (0) target = $region37
    $region36: #{tpu_custom_call.1} parent=1 // pred_region
      %73 = dma.done [#allocation7], 2048
    $region37: #{tpu_custom_call.1} parent=1 // pred_fallthru
      _
    // Predicated region
    $region38: #{tpu_custom_call.1} parent=1 // pred_check
      _
    $region39: #{tpu_custom_call.1} parent=1 // pred_check_branch
      %75 = sbr.rel (0) target = $region41
    $region40: #{tpu_custom_call.1} parent=1 // pred_region
      %76 = dma.done [#allocation7], 2048
    $region41: #{tpu_custom_call.1} parent=1 // pred_fallthru
      _
    // Predicated region
    $region42: #{tpu_custom_call.1} parent=1 // pred_check
      _
    $region43: #{tpu_custom_call.1} parent=1 // pred_check_branch
      %78 = sbr.rel (0) target = $region45
    $region44: #{tpu_custom_call.1} parent=1 // pred_region
      %79 = dma.done [#allocation10], 2048
    $region45: #{tpu_custom_call.1} parent=1 // pred_fallthru
      _
    %p80 = scmp.eq.s32.totalorder 0, 0
    // Predicated region
    $region46: #{tpu_custom_call.1} parent=1 // pred_check
      %p81 = pneg %p80
    $region47: #{tpu_custom_call.1} parent=1 // pred_check_branch
      %83 = sbr.rel (%p81) target = $region49
    $region48: #{tpu_custom_call.1} parent=1 // pred_region
      %84 = vst [vmem:[#allocation2] sm:$0xff] 0.0
    $region49: #{tpu_custom_call.1} parent=1 // pred_fallthru
      _
    %v85 = vld [vmem:[#allocation6] sm:$0xff]
    %v86 = vld [vmem:[#allocation6 + $0x8] sm:$0xff]
    %v87 = vld [vmem:[#allocation6 + $0x10] sm:$0xff]
    %v88 = vld [vmem:[#allocation6 + $0x18] sm:$0xff]
    %v89 = vld [vmem:[#allocation6 + $0x20] sm:$0xff]
    %v90 = vld [vmem:[#allocation6 + $0x28] sm:$0xff]
    %v91 = vld [vmem:[#allocation6 + $0x30] sm:$0xff]
    %v92 = vld [vmem:[#allocation6 + $0x38] sm:$0xff]
    %v93 = vld [vmem:[#allocation6 + $0x40] sm:$0xff]
    %v94 = vld [vmem:[#allocation6 + $0x48] sm:$0xff]
    %v95 = vld [vmem:[#allocation6 + $0x50] sm:$0xff]
    %v96 = vld [vmem:[#allocation6 + $0x58] sm:$0xff]
    %v97 = vld [vmem:[#allocation6 + $0x60] sm:$0xff]
    %v98 = vld [vmem:[#allocation6 + $0x68] sm:$0xff]
    %v99 = vld [vmem:[#allocation6 + $0x70] sm:$0xff]
    %v100 = vld [vmem:[#allocation6 + $0x78] sm:$0xff]
    %v101 = vld [vmem:[#allocation9] sm:$0xff]
    %v102 = vld [vmem:[#allocation9 + $0x8] sm:$0xff]
    %v103 = vld [vmem:[#allocation9 + $0x10] sm:$0xff]
    %v104 = vld [vmem:[#allocation9 + $0x18] sm:$0xff]
    %v105 = vld [vmem:[#allocation9 + $0x20] sm:$0xff]
    %v106 = vld [vmem:[#allocation9 + $0x28] sm:$0xff]
    %v107 = vld [vmem:[#allocation9 + $0x30] sm:$0xff]
    %v108 = vld [vmem:[#allocation9 + $0x38] sm:$0xff]
    %v109 = vld [vmem:[#allocation9 + $0x40] sm:$0xff]
    %v110 = vld [vmem:[#allocation9 + $0x48] sm:$0xff]
    %v111 = vld [vmem:[#allocation9 + $0x50] sm:$0xff]
    %v112 = vld [vmem:[#allocation9 + $0x58] sm:$0xff]
    %v113 = vld [vmem:[#allocation9 + $0x60] sm:$0xff]
    %v114 = vld [vmem:[#allocation9 + $0x68] sm:$0xff]
    %v115 = vld [vmem:[#allocation9 + $0x70] sm:$0xff]
    %v116 = vld [vmem:[#allocation9 + $0x78] sm:$0xff]
    %v117 = vld [vmem:[#allocation8] sm:$0xff]
    %v118 = vld [vmem:[#allocation8 + $0x8] sm:$0xff]
    %v119 = vld [vmem:[#allocation8 + $0x10] sm:$0xff]
    %v120 = vld [vmem:[#allocation8 + $0x18] sm:$0xff]
    %v121 = vld [vmem:[#allocation8 + $0x20] sm:$0xff]
    %v122 = vld [vmem:[#allocation8 + $0x28] sm:$0xff]
    %v123 = vld [vmem:[#allocation8 + $0x30] sm:$0xff]
    %v124 = vld [vmem:[#allocation8 + $0x38] sm:$0xff]
    %v125 = vld [vmem:[#allocation8 + $0x40] sm:$0xff]
    %v126 = vld [vmem:[#allocation8 + $0x48] sm:$0xff]
    %v127 = vld [vmem:[#allocation8 + $0x50] sm:$0xff]
    %v128 = vld [vmem:[#allocation8 + $0x58] sm:$0xff]
    %v129 = vld [vmem:[#allocation8 + $0x60] sm:$0xff]
    %v130 = vld [vmem:[#allocation8 + $0x68] sm:$0xff]
    %v131 = vld [vmem:[#allocation8 + $0x70] sm:$0xff]
    %v132 = vld [vmem:[#allocation8 + $0x78] sm:$0xff]
    %v133 = vmul.f32 %v101, %v117
    %v134 = vmul.f32 %v102, %v118
    %v135 = vmul.f32 %v103, %v119
    %v136 = vmul.f32 %v104, %v120
    %v137 = vmul.f32 %v105, %v121
    %v138 = vmul.f32 %v106, %v122
    %v139 = vmul.f32 %v107, %v123
    %v140 = vmul.f32 %v108, %v124
    %v141 = vmul.f32 %v109, %v125
    %v142 = vmul.f32 %v110, %v126
    %v143 = vmul.f32 %v111, %v127
    %v144 = vmul.f32 %v112, %v128
    %v145 = vmul.f32 %v113, %v129
    %v146 = vmul.f32 %v114, %v130
    %v147 = vmul.f32 %v115, %v131
    %v148 = vmul.f32 %v116, %v132
    %v149 = vadd.f32 %v85, %v133
    %v150 = vadd.f32 %v86, %v134
    %v151 = vadd.f32 %v87, %v135
    %v152 = vadd.f32 %v88, %v136
    %v153 = vadd.f32 %v89, %v137
    %v154 = vadd.f32 %v90, %v138
    %v155 = vadd.f32 %v91, %v139
    %v156 = vadd.f32 %v92, %v140
    %v157 = vadd.f32 %v93, %v141
    %v158 = vadd.f32 %v94, %v142
    %v159 = vadd.f32 %v95, %v143
    %v160 = vadd.f32 %v96, %v144
    %v161 = vadd.f32 %v97, %v145
    %v162 = vadd.f32 %v98, %v146
    %v163 = vadd.f32 %v99, %v147
    %v164 = vadd.f32 %v100, %v148
    %v165 = vld [vmem:[#allocation3] sm:$0xff]
    %v166 = vld [vmem:[#allocation2] sm:$0xff]
    %167 = vmatprep.subr.mxu0 0.0
    %168 = vmatpush1.xpose.msra.mxu0 %v164
    %169 = vmatprep.subr.mxu0 0.0
    %170 = vmatpush1.xpose.msra.mxu0 %v163
    %171 = vmatprep.subr.mxu0 0.0
    %172 = vmatpush1.xpose.msra.mxu0 %v162
    %173 = vmatprep.subr.mxu0 0.0
    %174 = vmatpush1.xpose.msra.mxu0 %v161
    %175 = vmatprep.subr.mxu0 0.0
    %176 = vmatpush1.xpose.msra.mxu0 %v160
    %177 = vmatprep.subr.mxu0 0.0
    %178 = vmatpush1.xpose.msra.mxu0 %v159
    %179 = vmatprep.subr.mxu0 0.0
    %180 = vmatpush1.xpose.msra.mxu0 %v158
    %181 = vmatprep.subr.mxu0 0.0
    %182 = vmatpush1.xpose.msra.mxu0 %v157
    %183 = vmatprep.subr.mxu0 0.0
    %184 = vmatpush1.xpose.msra.mxu0 %v156
    %185 = vmatprep.subr.mxu0 0.0
    %186 = vmatpush1.xpose.msra.mxu0 %v155
    %187 = vmatprep.subr.mxu0 0.0
    %188 = vmatpush1.xpose.msra.mxu0 %v154
    %189 = vmatprep.subr.mxu0 0.0
    %190 = vmatpush1.xpose.msra.mxu0 %v153
    %191 = vmatprep.subr.mxu0 0.0
    %192 = vmatpush1.xpose.msra.mxu0 %v152
    %193 = vmatprep.subr.mxu0 0.0
    %194 = vmatpush1.xpose.msra.mxu0 %v151
    %195 = vmatprep.subr.mxu0 0.0
    %196 = vmatpush1.xpose.msra.mxu0 %v150
    %197 = vmatprep.subr.mxu0 0.0
    %198 = vmatpush1.xpose.msra.mxu0 %v149
    %199 = vmatprep.subr.mxu0 0.0
    %200 = vmatpush2.xpose.msra.mxu0 0.0
    %201 = vmatprep.subr.mxu0 0.0
    %202 = vmatpush2.xpose.msra.mxu0 0.0
    %203 = vmatprep.subr.mxu0 0.0
    %204 = vmatpush2.xpose.msra.mxu0 0.0
    %205 = vmatprep.subr.mxu0 0.0
    %206 = vmatpush2.xpose.msra.mxu0 0.0
    %207 = vmatprep.subr.mxu0 0.0
    %208 = vmatpush2.xpose.msra.mxu0 0.0
    %209 = vmatprep.subr.mxu0 0.0
    %210 = vmatpush2.xpose.msra.mxu0 0.0
    %211 = vmatprep.subr.mxu0 0.0
    %212 = vmatpush2.xpose.msra.mxu0 0.0
    %213 = vmatprep.subr.mxu0 0.0
    %214 = vmatpush2.xpose.msra.mxu0 0.0
    %215 = vmatprep.subr.mxu0 0.0
    %216 = vmatpush2.xpose.msra.mxu0 0.0
    %217 = vmatprep.subr.mxu0 0.0
    %218 = vmatpush2.xpose.msra.mxu0 0.0
    %219 = vmatprep.subr.mxu0 0.0
    %220 = vmatpush2.xpose.msra.mxu0 0.0
    %221 = vmatprep.subr.mxu0 0.0
    %222 = vmatpush2.xpose.msra.mxu0 0.0
    %223 = vmatprep.subr.mxu0 0.0
    %224 = vmatpush2.xpose.msra.mxu0 0.0
    %225 = vmatprep.subr.mxu0 0.0
    %226 = vmatpush2.xpose.msra.mxu0 0.0
    %227 = vmatprep.subr.mxu0 0.0
    %228 = vmatpush2.xpose.msra.mxu0 0.0
    %229 = vmatprep.subr.mxu0 0.0
    %230 = vmatpush2.xpose.msra.mxu0 0.0
    %231 = vmatprep.mubr.f32.mxu0 0.0
    %232 = vmatmul.mubr.f32.gmra.mxu0 %v165
    %v233 = vpop.f32.mrf.mxu0
    %v234 = vadd.f32 0.0, %v233
    %v235 = vpop.f32.mrf.mxu0
    %236 = vdwg.mxu0
    %v237 = vadd.f32 %v166, %v234
    %238 = vst [vmem:[#allocation2] sm:$0xff] %v237
    // Predicated region
    $region50: #{tpu_custom_call.1} parent=1 // pred_check
      %p239 = pneg %p80
    $region51: #{tpu_custom_call.1} parent=1 // pred_check_branch
      %241 = sbr.rel (%p239) target = $region53
    $region52: #{tpu_custom_call.1} parent=1 // pred_region
      %v242 = vld [vmem:[%s4] sm:$0x1]
      %v243 = vld [vmem:[%s6] sm:$0x1]
      %v244 = vld [vmem:[%s5] sm:$0x1]
      %v245 = vmul.f32 %v243, %v244
      %v246 = vadd.f32 %v242, %v245
      %v247 = vld [vmem:[#allocation2] sm:$0xff]
      %v249 = vlaneseq
      %v250 = vshrl.u32 %v249, 7
      %v251 = vsub.s32 0, %v250
      %v252 = vrot.slane %v246, %v251
      %v254 = vadd.f32 %v247, %v252
      %255 = vst [vmem:[#allocation11] sm:$0xff] %v254
    $region53: #{tpu_custom_call.1} parent=1 // pred_fallthru
      _
    // Predicated region
    $region54: #{tpu_custom_call.1} parent=1 // pred_check
      _
    $region55: #{tpu_custom_call.1} parent=1 // pred_check_branch
      %257 = sbr.rel (0) target = $region57
    $region56: #{tpu_custom_call.1} parent=1 // pred_region
      %s259 = ssub.s32 128, 128
      %260 = vsyncadd [#allocation5], %s259
      %s262 = sshll.u32 [#allocation11], 4
      %s263 = int_to_ptr.vmem [resolvable:$true] %s262
      %265 = dma.vmem_to_hbm [thread:$0]  %s263, 128, %s7, [#allocation5]
    $region57: #{tpu_custom_call.1} parent=1 // pred_fallthru
      _
    // Predicated region
    $region58: #{tpu_custom_call.1} parent=1 // pred_check
      _
    $region59: #{tpu_custom_call.1} parent=1 // pred_check_branch
      %267 = sbr.rel (0) target = $region61
    $region60: #{tpu_custom_call.1} parent=1 // pred_region
      %268 = dma.done [#allocation5], 128
    $region61: #{tpu_custom_call.1} parent=1 // pred_fallthru
      _
    %269 = vsyncpa [#allocation4], 1
    %270 = vsyncpa [#allocation7], 1
    %271 = vsyncpa [#allocation10], 1
    %272 = vsyncpa [#allocation5], 1

</llo_original>
